<compile_context>
chip_gen: v6e
topology: v6e:2x2x1
jax: 0.10.0
libtpu: 0.0.40
codegen_flags: <defaults>
</compile_context>

<pallas_src>
from functools import partial

import jax
import jax.numpy as jnp
from jax.experimental import pallas as pl
from jax.experimental.pallas import tpu as pltpu


def _dist_loss_kernel(s_ref, t_ref, mom_ref, inter_ref, *, inv_temp, inv_c,
                      eps, batch, block_b, blocks_per_core, need_mask):
    i = pl.program_id(1)

    # ----- init per-core accumulators (outputs resident across inner axis) --
    @pl.when(i == 0)
    def _init():
        mom_ref[...] = jnp.zeros_like(mom_ref)
        inter_ref[...] = jnp.zeros_like(inter_ref)

    tb, num_classes = s_ref.shape
    g = tb // 8                                   # sublane groups per tile

    # ----- softmax over classes (last dim) ----------------------------------
    def softmax(x):
        m = jnp.max(x, axis=-1, keepdims=True)
        e = jnp.exp(x - m)                        # EUP
        s = jnp.sum(e, axis=-1, keepdims=True)
        # Exact reciprocal: it is a (TB, 1) op, negligible cost, max accuracy.
        return e * pl.reciprocal(s, approx=False)

    # Shifted probabilities: row mean of softmax is exactly 1/C, so a/b are the
    # centered values for the row Pearson and a constant shift for the column
    # Pearson (which is shift-invariant).
    a = softmax(s_ref[...].astype(jnp.float32) * inv_temp) - inv_c
    b = softmax(t_ref[...].astype(jnp.float32) * inv_temp) - inv_c

    if need_mask:
        # Only the post-softmax mask is needed: padded-row garbage (even NaN)
        # is discarded by the select, so masked rows contribute nothing to the
        # column moments and give corr_r = 0/(0+eps) = 0 for the row term.
        core = pl.program_id(0)
        row0 = (core * blocks_per_core + i) * block_b
        row = jax.lax.broadcasted_iota(jnp.int32, (tb, 1), 0) + row0
        valid = row < batch
        a = jnp.where(valid, a, 0.0)
        b = jnp.where(valid, b, 0.0)

    def col_acc(x):
        # (TB, C) -> (8, C): sum over sublane groups = pure VPU vreg adds.
        return jnp.sum(x.reshape(g, 8, num_classes), axis=0)

    # ----- interleave products with their reductions (limit live f32 tiles) -
    ab = a * b
    num_r = jnp.sum(ab, axis=-1, keepdims=True)               # (TB, 1)
    mom_ref[2] += col_acc(ab)
    aa = a * a
    va_r = jnp.sum(aa, axis=-1, keepdims=True)
    mom_ref[3] += col_acc(aa)
    bb = b * b
    vb_r = jnp.sum(bb, axis=-1, keepdims=True)
    mom_ref[4] += col_acc(bb)
    mom_ref[0] += col_acc(a)
    mom_ref[1] += col_acc(b)

    # ----- row-wise Pearson over classes (inter term) -----------------------
    # den = sqrt(va*vb)+eps == sqrt(va)*sqrt(vb)+eps (reference) in exact math.
    corr_r = num_r / (jnp.sqrt(va_r * vb_r) + eps)             # (TB, 1)
    inter_ref[...] += jnp.sum(corr_r.reshape(g, 8, 1), axis=0)  # (8, 1) partial


def dist_loss(logits_student, logits_teacher, *, beta=2.0, gamma=2.0,
              temperature=4.0, eps=1e-8, block_b=None):
    """DIST loss. Inputs may be f32 or bf16; math runs in f32 inside the kernel."""
    B, C = logits_student.shape
    assert logits_teacher.shape == (B, C)
    itemsize = jnp.dtype(logits_student.dtype).itemsize

    # ---------------- VMEM-aware batch-tile selection ------------------------
    try:
        vmem_cap = int(pltpu.get_tpu_info().vmem_capacity_bytes)
    except Exception:                               # pragma: no cover
        vmem_cap = 64 << 20                         # conservative (v7x per-TC)
    budget = min(int(vmem_cap * 0.6), 48 << 20)
    # 2 inputs x 2 pipeline buffers + ~6 live f32 (TB, C) intermediates.
    per_row = (4 * itemsize + 6 * 4) * C
    fixed = (5 * 8 * C + 8) * 4 * 2 + (1 << 20)     # accumulator blocks + headroom
    if block_b is None:
        tb = max(8, (budget - fixed) // max(per_row, 1))
        tb = min(int(tb), 1024)
    else:
        tb = int(block_b)
    tb = max(8, (tb // 8) * 8)                      # sublane-aligned
    if B >= 8:
        tb = min(tb, (B // 8) * 8)                  # never exceed aligned batch
    # Prefer a tile that divides B exactly so masking is compiled out.
    if B % 8 == 0 and B % tb != 0:
        cand = tb
        while cand >= 8 and B % cand != 0:
            cand -= 8
        if cand >= max(8, tb // 2):
            tb = cand

    nb = -(-B // tb)                                # total batch blocks
    num_cores = 2 if nb >= 2 else 1                 # v7x: one half per TensorCore
    nbi = -(-nb // num_cores)                       # blocks per core
    need_mask = (num_cores * nbi * tb) != B
    last_blk = nb - 1

    vmem_limit = int(min(vmem_cap - (2 << 20),
                         max(tb * per_row + fixed + (4 << 20), 32 << 20)))

    kernel = partial(_dist_loss_kernel,
                     inv_temp=1.0 / float(temperature), inv_c=1.0 / float(C),
                     eps=float(eps), batch=B, block_b=tb,
                     blocks_per_core=nbi, need_mask=need_mask)

    # Clamp the block index so a fully out-of-range block (odd nb split across
    # 2 cores) re-reads a valid block; its rows are masked out anyway.
    in_map = lambda c, i: (jnp.minimum(c * nbi + i, last_blk), 0)

    mom, inter_part = pl.pallas_call(
        kernel,
        out_shape=(jax.ShapeDtypeStruct((num_cores, 5, 8, C), jnp.float32),
                   jax.ShapeDtypeStruct((num_cores, 8, 1), jnp.float32)),
        grid=(num_cores, nbi),
        in_specs=[pl.BlockSpec((tb, C), in_map),
                  pl.BlockSpec((tb, C), in_map)],
        # Per-core accumulators: same block across the inner (arbitrary) axis.
        # TODO(synk): if a v7x trace shows exposed DMA for tiny C, bump the
        # in_specs to pipeline_mode=pl.Buffered(3).
        out_specs=(pl.BlockSpec((None, 5, 8, C), lambda c, i: (c, 0, 0, 0)),
                   pl.BlockSpec((None, 8, 1), lambda c, i: (c, 0, 0))),
        compiler_params=pltpu.CompilerParams(
            dimension_semantics=("parallel", "arbitrary"),
            vmem_limit_bytes=vmem_limit),
    )(logits_student, logits_teacher)

    # ---------------- tiny finalize (per-class Pearson + combine) -----------
    m = jnp.sum(mom, axis=(0, 2))                   # (5, C): Sa, Sb, Sab, Saa, Sbb
    sa, sb, sab, saa, sbb = m[0], m[1], m[2], m[3], m[4]
    num_c = sab - sa * sb / B
    va_c = jnp.maximum(saa - sa * sa / B, 0.0)
    vb_c = jnp.maximum(sbb - sb * sb / B, 0.0)
    corr_c = num_c / (jnp.sqrt(va_c) * jnp.sqrt(vb_c) + eps)
    intra = 1.0 - jnp.mean(corr_c)
    inter = 1.0 - jnp.sum(inter_part) / B
    t2 = float(temperature) * float(temperature)
    return beta * t2 * inter + gamma * t2 * intra


def _dist_loss_ref(logits_student, logits_teacher, beta=2.0, gamma=2.0, eps=1e-8):
    # Pure-JAX reference (mirrors the PyTorch module).
    y_s = jax.nn.softmax(logits_student.astype(jnp.float32) / 4.0, axis=1)
    y_t = jax.nn.softmax(logits_teacher.astype(jnp.float32) / 4.0, axis=1)

    def pearson_rows(a, b):
        a = a - a.mean(axis=1, keepdims=True)
        b = b - b.mean(axis=1, keepdims=True)
        num = (a * b).sum(axis=1)
        den = jnp.linalg.norm(a, axis=1) * jnp.linalg.norm(b, axis=1) + eps
        return num / den

    inter = 1.0 - pearson_rows(y_s, y_t).mean()
    intra = 1.0 - pearson_rows(y_s.T, y_t.T).mean()
    return beta * 16.0 * inter + gamma * 16.0 * intra


if __name__ == "__main__":
    key = jax.random.PRNGKey(0)
    k1, k2, k3, k4 = jax.random.split(key, 4)

    # Shapes consistent with the module: logits are (batch, num_classes).
    B, C = 20, 40
    logits_student = jax.random.normal(k1, (B, C), dtype=jnp.float32)
    logits_teacher = jax.random.normal(k2, (B, C), dtype=jnp.float32)
    ref = _dist_loss_ref(logits_student, logits_teacher)

    # Multi-block, ragged batch (exercises masking + 2-core split + clamp).
    loss_tiled = jax.block_until_ready(
        dist_loss(logits_student, logits_teacher, block_b=8))
    # Auto tile path.
    loss_auto = jax.block_until_ready(dist_loss(logits_student, logits_teacher))
    assert jnp.allclose(loss_tiled, ref, rtol=1e-4, atol=1e-4), (loss_tiled, ref)
    assert jnp.allclose(loss_auto, ref, rtol=1e-4, atol=1e-4), (loss_auto, ref)

    # Divisible batch: masking is statically compiled out.
    B2 = 32
    ls2 = jax.random.normal(k3, (B2, C), dtype=jnp.float32)
    lt2 = jax.random.normal(k4, (B2, C), dtype=jnp.float32)
    ref2 = _dist_loss_ref(ls2, lt2)
    loss2 = jax.block_until_ready(dist_loss(ls2, lt2, block_b=8))
    assert jnp.allclose(loss2, ref2, rtol=1e-4, atol=1e-4), (loss2, ref2)

    print("KERNEL_OK")
</pallas_src>

<mosaic_0001>
module attributes {stable_mosaic.version = 11 : i64} {
  func.func @_dist_loss_kernel(%arg0: i32, %arg1: i32, %arg2: memref<8x40xf32, #tpu.memory_space<vmem>>, %arg3: memref<8x40xf32, #tpu.memory_space<vmem>>, %arg4: memref<1x5x8x40xf32, #tpu.memory_space<vmem>>, %arg5: memref<1x8x1xf32, #tpu.memory_space<vmem>>) attributes {dimension_semantics = [#tpu.dimension_semantics<parallel>, #tpu.dimension_semantics<arbitrary>], iteration_bounds = array<i64: 2, 2>, scalar_prefetch = 0 : i64, scratch_operands = 0 : i64, tpu.core_type = #tpu.core_type<tc>, window_params = [{transform_indices = @transform_0, window_bounds = array<i64: 8, 40>}, {transform_indices = @transform_1, window_bounds = array<i64: 8, 40>}, {transform_indices = @transform_2, window_bounds = array<i64: 1, 5, 8, 40>}, {transform_indices = @transform_3, window_bounds = array<i64: 1, 8, 1>}]} {
    %c0_i32 = arith.constant 0 : i32
    %0 = arith.cmpi eq, %arg1, %c0_i32 : i32
    %1 = arith.extui %0 : i1 to i32
    %c0_i32_0 = arith.constant 0 : i32
    %2 = arith.cmpi ne, %1, %c0_i32_0 : i32
    scf.if %2 {
      %cst_65 = arith.constant 0.000000e+00 : f32
      %111 = vector.broadcast %cst_65 : f32 to vector<5x8x40xf32>
      %c0_66 = arith.constant 0 : index
      %c0_67 = arith.constant 0 : index
      %c0_68 = arith.constant 0 : index
      %c0_69 = arith.constant 0 : index
      %112 = vector.load %arg4[%c0_66, %c0_67, %c0_68, %c0_69] : memref<1x5x8x40xf32, #tpu.memory_space<vmem>>, vector<1x5x8x40xf32>
      %113 = vector.shape_cast %112 : vector<1x5x8x40xf32> to vector<5x8x40xf32>
      %114 = vector.shape_cast %111 : vector<5x8x40xf32> to vector<1x5x8x40xf32>
      tpu.vector_store %arg4[%c0_66, %c0_67, %c0_68, %c0_69], %114 {strides = array<i32>} : memref<1x5x8x40xf32, #tpu.memory_space<vmem>>, vector<1x5x8x40xf32>,
      %cst_70 = arith.constant 0.000000e+00 : f32
      %115 = vector.broadcast %cst_70 : f32 to vector<8x1xf32>
      %c0_71 = arith.constant 0 : index
      %c0_72 = arith.constant 0 : index
      %c0_73 = arith.constant 0 : index
      %116 = vector.load %arg5[%c0_71, %c0_72, %c0_73] : memref<1x8x1xf32, #tpu.memory_space<vmem>>, vector<1x8x1xf32>
      %117 = vector.shape_cast %116 : vector<1x8x1xf32> to vector<8x1xf32>
      %118 = vector.shape_cast %115 : vector<8x1xf32> to vector<1x8x1xf32>
      tpu.vector_store %arg5[%c0_71, %c0_72, %c0_73], %118 {strides = array<i32>} : memref<1x8x1xf32, #tpu.memory_space<vmem>>, vector<1x8x1xf32>,
    } else {
    }
    %c0 = arith.constant 0 : index
    %c0_1 = arith.constant 0 : index
    %3 = vector.load %arg2[%c0, %c0_1] : memref<8x40xf32, #tpu.memory_space<vmem>>, vector<8x40xf32>
    %cst = arith.constant 2.500000e-01 : f32
    %4 = vector.broadcast %cst : f32 to vector<8x40xf32>
    %5 = arith.mulf %3, %4 : vector<8x40xf32>
    %cst_2 = arith.constant dense<0xFF800000> : vector<8xf32>
    %6 = vector.multi_reduction <maximumf>, %5, %cst_2 [1] : vector<8x40xf32> to vector<8xf32>
    %7 = vector.shape_cast %6 : vector<8xf32> to vector<8x1xf32>
    %8 = vector.broadcast %7 : vector<8x1xf32> to vector<8x40xf32>
    %9 = arith.subf %5, %8 : vector<8x40xf32>
    %10 = math.exp %9 : vector<8x40xf32>
    %cst_3 = arith.constant dense<0.000000e+00> : vector<8xf32>
    %11 = vector.multi_reduction <add>, %10, %cst_3 [1] : vector<8x40xf32> to vector<8xf32>
    %12 = vector.shape_cast %11 : vector<8xf32> to vector<8x1xf32>
    %13 = tpu.reciprocal %12 : vector<8x1xf32> -> vector<8x1xf32>
    %14 = vector.broadcast %13 : vector<8x1xf32> to vector<8x40xf32>
    %15 = arith.mulf %10, %14 : vector<8x40xf32>
    %cst_4 = arith.constant 2.500000e-02 : f32
    %16 = vector.broadcast %cst_4 : f32 to vector<8x40xf32>
    %17 = arith.subf %15, %16 : vector<8x40xf32>
    %c0_5 = arith.constant 0 : index
    %c0_6 = arith.constant 0 : index
    %18 = vector.load %arg3[%c0_5, %c0_6] : memref<8x40xf32, #tpu.memory_space<vmem>>, vector<8x40xf32>
    %cst_7 = arith.constant 2.500000e-01 : f32
    %19 = vector.broadcast %cst_7 : f32 to vector<8x40xf32>
    %20 = arith.mulf %18, %19 : vector<8x40xf32>
    %cst_8 = arith.constant dense<0xFF800000> : vector<8xf32>
    %21 = vector.multi_reduction <maximumf>, %20, %cst_8 [1] : vector<8x40xf32> to vector<8xf32>
    %22 = vector.shape_cast %21 : vector<8xf32> to vector<8x1xf32>
    %23 = vector.broadcast %22 : vector<8x1xf32> to vector<8x40xf32>
    %24 = arith.subf %20, %23 : vector<8x40xf32>
    %25 = math.exp %24 : vector<8x40xf32>
    %cst_9 = arith.constant dense<0.000000e+00> : vector<8xf32>
    %26 = vector.multi_reduction <add>, %25, %cst_9 [1] : vector<8x40xf32> to vector<8xf32>
    %27 = vector.shape_cast %26 : vector<8xf32> to vector<8x1xf32>
    %28 = tpu.reciprocal %27 : vector<8x1xf32> -> vector<8x1xf32>
    %29 = vector.broadcast %28 : vector<8x1xf32> to vector<8x40xf32>
    %30 = arith.mulf %25, %29 : vector<8x40xf32>
    %cst_10 = arith.constant 2.500000e-02 : f32
    %31 = vector.broadcast %cst_10 : f32 to vector<8x40xf32>
    %32 = arith.subf %30, %31 : vector<8x40xf32>
    %c2_i32 = arith.constant 2 : i32
    %33 = arith.muli %arg0, %c2_i32 : i32
    %34 = arith.addi %33, %arg1 : i32
    %c8_i32 = arith.constant 8 : i32
    %35 = arith.muli %34, %c8_i32 : i32
    %36 = tpu.iota {dimensions = array<i32: 0>} : vector<8x1xi32>
    %37 = vector.broadcast %35 : i32 to vector<8x1xi32>
    %38 = arith.addi %36, %37 : vector<8x1xi32>
    %c20_i32 = arith.constant 20 : i32
    %39 = vector.broadcast %c20_i32 : i32 to vector<8x1xi32>
    %40 = arith.cmpi slt, %38, %39 : vector<8x1xi32>
    %cst_11 = arith.constant 0.000000e+00 : f32
    %41 = vector.shape_cast %40 : vector<8x1xi1> to vector<8x1xi1>
    %42 = vector.broadcast %41 : vector<8x1xi1> to vector<8x40xi1>
    %43 = vector.broadcast %cst_11 : f32 to vector<8x40xf32>
    %44 = arith.select %42, %17, %43 : vector<8x40xi1>, vector<8x40xf32>
    %cst_12 = arith.constant 0.000000e+00 : f32
    %45 = vector.shape_cast %40 : vector<8x1xi1> to vector<8x1xi1>
    %46 = vector.broadcast %45 : vector<8x1xi1> to vector<8x40xi1>
    %47 = vector.broadcast %cst_12 : f32 to vector<8x40xf32>
    %48 = arith.select %46, %32, %47 : vector<8x40xi1>, vector<8x40xf32>
    %49 = arith.mulf %44, %48 : vector<8x40xf32>
    %cst_13 = arith.constant dense<0.000000e+00> : vector<8xf32>
    %50 = vector.multi_reduction <add>, %49, %cst_13 [1] : vector<8x40xf32> to vector<8xf32>
    %51 = vector.shape_cast %50 : vector<8xf32> to vector<8x1xf32>
    %c0_14 = arith.constant 0 : index
    %c2 = arith.constant 2 : index
    %c0_15 = arith.constant 0 : index
    %c0_16 = arith.constant 0 : index
    %52 = vector.load %arg4[%c0_14, %c2, %c0_15, %c0_16] : memref<1x5x8x40xf32, #tpu.memory_space<vmem>>, vector<1x1x8x40xf32>
    %53 = vector.shape_cast %52 : vector<1x1x8x40xf32> to vector<8x40xf32>
    %54 = vector.shape_cast %49 : vector<8x40xf32> to vector<1x8x40xf32>
    %cst_17 = arith.constant dense<0.000000e+00> : vector<8x40xf32>
    %55 = vector.multi_reduction <add>, %54, %cst_17 [0] : vector<1x8x40xf32> to vector<8x40xf32>
    %56 = arith.addf %53, %55 : vector<8x40xf32>
    %c0_18 = arith.constant 0 : index
    %c2_19 = arith.constant 2 : index
    %c0_20 = arith.constant 0 : index
    %c0_21 = arith.constant 0 : index
    %57 = vector.load %arg4[%c0_18, %c2_19, %c0_20, %c0_21] : memref<1x5x8x40xf32, #tpu.memory_space<vmem>>, vector<1x1x8x40xf32>
    %58 = vector.shape_cast %57 : vector<1x1x8x40xf32> to vector<8x40xf32>
    %59 = vector.shape_cast %56 : vector<8x40xf32> to vector<1x1x8x40xf32>
    tpu.vector_store %arg4[%c0_18, %c2_19, %c0_20, %c0_21], %59 {strides = array<i32>} : memref<1x5x8x40xf32, #tpu.memory_space<vmem>>, vector<1x1x8x40xf32>,
    %60 = arith.mulf %44, %44 : vector<8x40xf32>
    %cst_22 = arith.constant dense<0.000000e+00> : vector<8xf32>
    %61 = vector.multi_reduction <add>, %60, %cst_22 [1] : vector<8x40xf32> to vector<8xf32>
    %62 = vector.shape_cast %61 : vector<8xf32> to vector<8x1xf32>
    %c0_23 = arith.constant 0 : index
    %c3 = arith.constant 3 : index
    %c0_24 = arith.constant 0 : index
    %c0_25 = arith.constant 0 : index
    %63 = vector.load %arg4[%c0_23, %c3, %c0_24, %c0_25] : memref<1x5x8x40xf32, #tpu.memory_space<vmem>>, vector<1x1x8x40xf32>
    %64 = vector.shape_cast %63 : vector<1x1x8x40xf32> to vector<8x40xf32>
    %65 = vector.shape_cast %60 : vector<8x40xf32> to vector<1x8x40xf32>
    %cst_26 = arith.constant dense<0.000000e+00> : vector<8x40xf32>
    %66 = vector.multi_reduction <add>, %65, %cst_26 [0] : vector<1x8x40xf32> to vector<8x40xf32>
    %67 = arith.addf %64, %66 : vector<8x40xf32>
    %c0_27 = arith.constant 0 : index
    %c3_28 = arith.constant 3 : index
    %c0_29 = arith.constant 0 : index
    %c0_30 = arith.constant 0 : index
    %68 = vector.load %arg4[%c0_27, %c3_28, %c0_29, %c0_30] : memref<1x5x8x40xf32, #tpu.memory_space<vmem>>, vector<1x1x8x40xf32>
    %69 = vector.shape_cast %68 : vector<1x1x8x40xf32> to vector<8x40xf32>
    %70 = vector.shape_cast %67 : vector<8x40xf32> to vector<1x1x8x40xf32>
    tpu.vector_store %arg4[%c0_27, %c3_28, %c0_29, %c0_30], %70 {strides = array<i32>} : memref<1x5x8x40xf32, #tpu.memory_space<vmem>>, vector<1x1x8x40xf32>,
    %71 = arith.mulf %48, %48 : vector<8x40xf32>
    %cst_31 = arith.constant dense<0.000000e+00> : vector<8xf32>
    %72 = vector.multi_reduction <add>, %71, %cst_31 [1] : vector<8x40xf32> to vector<8xf32>
    %73 = vector.shape_cast %72 : vector<8xf32> to vector<8x1xf32>
    %c0_32 = arith.constant 0 : index
    %c4 = arith.constant 4 : index
    %c0_33 = arith.constant 0 : index
    %c0_34 = arith.constant 0 : index
    %74 = vector.load %arg4[%c0_32, %c4, %c0_33, %c0_34] : memref<1x5x8x40xf32, #tpu.memory_space<vmem>>, vector<1x1x8x40xf32>
    %75 = vector.shape_cast %74 : vector<1x1x8x40xf32> to vector<8x40xf32>
    %76 = vector.shape_cast %71 : vector<8x40xf32> to vector<1x8x40xf32>
    %cst_35 = arith.constant dense<0.000000e+00> : vector<8x40xf32>
    %77 = vector.multi_reduction <add>, %76, %cst_35 [0] : vector<1x8x40xf32> to vector<8x40xf32>
    %78 = arith.addf %75, %77 : vector<8x40xf32>
    %c0_36 = arith.constant 0 : index
    %c4_37 = arith.constant 4 : index
    %c0_38 = arith.constant 0 : index
    %c0_39 = arith.constant 0 : index
    %79 = vector.load %arg4[%c0_36, %c4_37, %c0_38, %c0_39] : memref<1x5x8x40xf32, #tpu.memory_space<vmem>>, vector<1x1x8x40xf32>
    %80 = vector.shape_cast %79 : vector<1x1x8x40xf32> to vector<8x40xf32>
    %81 = vector.shape_cast %78 : vector<8x40xf32> to vector<1x1x8x40xf32>
    tpu.vector_store %arg4[%c0_36, %c4_37, %c0_38, %c0_39], %81 {strides = array<i32>} : memref<1x5x8x40xf32, #tpu.memory_space<vmem>>, vector<1x1x8x40xf32>,
    %c0_40 = arith.constant 0 : index
    %c0_41 = arith.constant 0 : index
    %c0_42 = arith.constant 0 : index
    %c0_43 = arith.constant 0 : index
    %82 = vector.load %arg4[%c0_40, %c0_41, %c0_42, %c0_43] : memref<1x5x8x40xf32, #tpu.memory_space<vmem>>, vector<1x1x8x40xf32>
    %83 = vector.shape_cast %82 : vector<1x1x8x40xf32> to vector<8x40xf32>
    %84 = vector.shape_cast %44 : vector<8x40xf32> to vector<1x8x40xf32>
    %cst_44 = arith.constant dense<0.000000e+00> : vector<8x40xf32>
    %85 = vector.multi_reduction <add>, %84, %cst_44 [0] : vector<1x8x40xf32> to vector<8x40xf32>
    %86 = arith.addf %83, %85 : vector<8x40xf32>
    %c0_45 = arith.constant 0 : index
    %c0_46 = arith.constant 0 : index
    %c0_47 = arith.constant 0 : index
    %c0_48 = arith.constant 0 : index
    %87 = vector.load %arg4[%c0_45, %c0_46, %c0_47, %c0_48] : memref<1x5x8x40xf32, #tpu.memory_space<vmem>>, vector<1x1x8x40xf32>
    %88 = vector.shape_cast %87 : vector<1x1x8x40xf32> to vector<8x40xf32>
    %89 = vector.shape_cast %86 : vector<8x40xf32> to vector<1x1x8x40xf32>
    tpu.vector_store %arg4[%c0_45, %c0_46, %c0_47, %c0_48], %89 {strides = array<i32>} : memref<1x5x8x40xf32, #tpu.memory_space<vmem>>, vector<1x1x8x40xf32>,
    %c0_49 = arith.constant 0 : index
    %c1 = arith.constant 1 : index
    %c0_50 = arith.constant 0 : index
    %c0_51 = arith.constant 0 : index
    %90 = vector.load %arg4[%c0_49, %c1, %c0_50, %c0_51] : memref<1x5x8x40xf32, #tpu.memory_space<vmem>>, vector<1x1x8x40xf32>
    %91 = vector.shape_cast %90 : vector<1x1x8x40xf32> to vector<8x40xf32>
    %92 = vector.shape_cast %48 : vector<8x40xf32> to vector<1x8x40xf32>
    %cst_52 = arith.constant dense<0.000000e+00> : vector<8x40xf32>
    %93 = vector.multi_reduction <add>, %92, %cst_52 [0] : vector<1x8x40xf32> to vector<8x40xf32>
    %94 = arith.addf %91, %93 : vector<8x40xf32>
    %c0_53 = arith.constant 0 : index
    %c1_54 = arith.constant 1 : index
    %c0_55 = arith.constant 0 : index
    %c0_56 = arith.constant 0 : index
    %95 = vector.load %arg4[%c0_53, %c1_54, %c0_55, %c0_56] : memref<1x5x8x40xf32, #tpu.memory_space<vmem>>, vector<1x1x8x40xf32>
    %96 = vector.shape_cast %95 : vector<1x1x8x40xf32> to vector<8x40xf32>
    %97 = vector.shape_cast %94 : vector<8x40xf32> to vector<1x1x8x40xf32>
    tpu.vector_store %arg4[%c0_53, %c1_54, %c0_55, %c0_56], %97 {strides = array<i32>} : memref<1x5x8x40xf32, #tpu.memory_space<vmem>>, vector<1x1x8x40xf32>,
    %98 = arith.mulf %62, %73 : vector<8x1xf32>
    %99 = math.sqrt %98 : vector<8x1xf32>
    %cst_57 = arith.constant 9.99999993E-9 : f32
    %100 = vector.broadcast %cst_57 : f32 to vector<8x1xf32>
    %101 = arith.addf %99, %100 : vector<8x1xf32>
    %102 = arith.divf %51, %101 : vector<8x1xf32>
    %c0_58 = arith.constant 0 : index
    %c0_59 = arith.constant 0 : index
    %c0_60 = arith.constant 0 : index
    %103 = vector.load %arg5[%c0_58, %c0_59, %c0_60] : memref<1x8x1xf32, #tpu.memory_space<vmem>>, vector<1x8x1xf32>
    %104 = vector.shape_cast %103 : vector<1x8x1xf32> to vector<8x1xf32>
    %105 = vector.shape_cast %102 : vector<8x1xf32> to vector<1x8x1xf32>
    %cst_61 = arith.constant dense<0.000000e+00> : vector<8x1xf32>
    %106 = vector.multi_reduction <add>, %105, %cst_61 [0] : vector<1x8x1xf32> to vector<8x1xf32>
    %107 = arith.addf %104, %106 : vector<8x1xf32>
    %c0_62 = arith.constant 0 : index
    %c0_63 = arith.constant 0 : index
    %c0_64 = arith.constant 0 : index
    %108 = vector.load %arg5[%c0_62, %c0_63, %c0_64] : memref<1x8x1xf32, #tpu.memory_space<vmem>>, vector<1x8x1xf32>
    %109 = vector.shape_cast %108 : vector<1x8x1xf32> to vector<8x1xf32>
    %110 = vector.shape_cast %107 : vector<8x1xf32> to vector<1x8x1xf32>
    tpu.vector_store %arg5[%c0_62, %c0_63, %c0_64], %110 {strides = array<i32>} : memref<1x8x1xf32, #tpu.memory_space<vmem>>, vector<1x8x1xf32>,
    return
  }
  func.func @transform_0(%arg0: i32, %arg1: i32) -> (i32, i32) {
    %c2_i32 = arith.constant 2 : i32
    %0 = arith.muli %arg0, %c2_i32 : i32
    %1 = arith.addi %0, %arg1 : i32
    %c2_i32_0 = arith.constant 2 : i32
    %2 = arith.minsi %1, %c2_i32_0 : i32
    %c0_i32 = arith.constant 0 : i32
    %c0_i32_1 = arith.constant 0 : i32
    return %2, %c0_i32 : i32, i32
  }
  func.func @transform_1(%arg0: i32, %arg1: i32) -> (i32, i32) {
    %c2_i32 = arith.constant 2 : i32
    %0 = arith.muli %arg0, %c2_i32 : i32
    %1 = arith.addi %0, %arg1 : i32
    %c2_i32_0 = arith.constant 2 : i32
    %2 = arith.minsi %1, %c2_i32_0 : i32
    %c0_i32 = arith.constant 0 : i32
    %c0_i32_1 = arith.constant 0 : i32
    return %2, %c0_i32 : i32, i32
  }
  func.func @transform_2(%arg0: i32, %arg1: i32) -> (i32, i32, i32, i32) {
    %c0_i32 = arith.constant 0 : i32
    %c0_i32_0 = arith.constant 0 : i32
    %c0_i32_1 = arith.constant 0 : i32
    %c0_i32_2 = arith.constant 0 : i32
    return %arg0, %c0_i32, %c0_i32_0, %c0_i32_1 : i32, i32, i32, i32
  }
  func.func @transform_3(%arg0: i32, %arg1: i32) -> (i32, i32, i32) {
    %c0_i32 = arith.constant 0 : i32
    %c0_i32_0 = arith.constant 0 : i32
    %c0_i32_1 = arith.constant 0 : i32
    return %arg0, %c0_i32, %c0_i32_0 : i32, i32, i32
  }
}

</mosaic_0001>

<llo_original>
// kernel: tpu_custom_call.1
$region0: #{tpu_custom_call.1}
  #allocation0 [shape = 'u32[]', space=smem, size = 0x4, offset = 0x4, fixed_abs, tag = 'smem constant byte address 0x4 - core index']
  #allocation1 [shape = 'u32[144,128]{1,0:T(1,128)}', space=vmem, size = 0x12000, scoped, tag = 'internal scratch']
  %s0 = inlined_call_operand.hbm [shape: f32[20,40], index: 0, kind: input, shape index: {}]
  %s1 = inlined_call_operand.hbm [shape: f32[20,40], index: 1, kind: input, shape index: {}]
  %s2 = inlined_call_operand.hbm [shape: f32[2,5,8,40], index: 2, kind: output, shape index: {0}]
  %s3 = inlined_call_operand.vmem [shape: f32[2,8,1], index: 3, kind: output, shape index: {1}]
  %4 = xla_tuple %s2, %s3
  %s5 = sld [smem:[#allocation0]]
  $region61: #{tpu_custom_call.1} parent=0
    _
  %s7 = ssub.s32 1, %s5
  %s8 = scalar_select 0, %s7, %s5
  $region1: #{tpu_custom_call.1} parent=0
    #allocation2 [shape = 'u8[8192]{0}', space=vmem, size = 0x2000, scoped, tag = 'input window, operand 0']
    #allocation3 [shape = 's32[2]{0}', space=sflag, size = 0x8, scoped, tag = 'scoped memory for tpu_custom_call.1']
    #allocation4 [shape = 's32[2]{0}', space=sflag, size = 0x8, scoped, tag = 'scoped memory for tpu_custom_call.1']
    #allocation5 [shape = 'u8[8192]{0}', space=vmem, size = 0x2000, scoped, tag = 'input window, operand 1']
    #allocation6 [shape = 's32[2]{0}', space=sflag, size = 0x8, scoped, tag = 'scoped memory for tpu_custom_call.1']
    #allocation7 [shape = 'u8[40960]{0}', space=vmem, size = 0xa000, scoped, tag = 'output window, operand 0']
    %9 = vsyncpa [#allocation3], 0
    %s10 = scalar_lea.sflag [#allocation3], 1
    %11 = vsyncpa %s10, 0
    %12 = vsyncpa [#allocation6], 0
    %s13 = scalar_lea.sflag [#allocation6], 1
    %14 = vsyncpa %s13, 0
    %15 = vsyncpa [#allocation4], 0
    %s16 = scalar_lea.sflag [#allocation4], 1
    %17 = vsyncpa %s16, 0
    loop: start=0, step=1, limit=6
    $region2: #{tpu_custom_call.1} parent=1 // loop_pre_header
      _
    $region3: #{tpu_custom_call.1} parent=1 // loop_header
      %s19 = sphi 0, %s23
      %p20 = scmp.ge.s32.totalorder %s19, 6
      %s26 = sphi 0, %s38
      %s27 = sphi 0, %s34
      %s28 = sphi 0, %s26
      %s29 = sphi 0, %s27
      %s30 = sphi 0, %s28
      %s31 = sphi 0, %s29
      %s49 = sphi 0, %s51
      %s52 = sphi 0, %s49
      %s53 = sphi 0, %s52
      %s69 = sphi 0, %s53
      %s83 = sphi 0, %s85
      %s86 = sphi 0, %s83
      %s87 = sphi 0, %s86
      %s103 = sphi 0, %s87
      %s109 = sphi 0, %s111
      %s112 = sphi 0, %s109
      %s113 = sphi 0, %s112
      %s129 = sphi 0, %s113
      %s135 = sphi 0, %s137
      %s138 = sphi 0, %s135
      %s139 = sphi 0, %s138
      %s155 = sphi 0, %s139
    $region4: #{tpu_custom_call.1} parent=1 // loop_header_branch
      %22 = sbr.rel (%p20) target = $region8
    $region5: #{tpu_custom_call.1} parent=1 // loop_body
      %s24 = ssub.s32 %s19, 1
      %s25 = ssub.s32 %s19, 2
      %s32 = sadd.s32 1, %s27
      %p33 = scmp.ge.s32.totalorder %s32, 2
      %s34 = scalar_select %p33, 0, %s32
      %s35 = sadd.s32 1, %s26
      %s36 = scalar_select %p33, %s35, %s26
      %p37 = scmp.ge.s32.totalorder %s36, 2
      %s38 = scalar_select %p37, 0, %s36
      %s39 = smul.u32 %s26, 2
      %s40 = sadd.s32 %s39, %s27
      %p41 = scmp.lt.s32.totalorder %s40, 2
      %s42 = scalar_select %p41, %s40, 2
      %s43 = smul.u32 %s38, 2
      %s44 = sadd.s32 %s43, %s34
      %p45 = scmp.lt.s32.totalorder %s44, 2
      %s46 = scalar_select %p45, %s44, 2
      %s47 = ssub.s32 %s42, %s46
      %p48 = scmp.eq.s32.totalorder %s47, 0
      %s50 = sadd.s32 %s49, 1
      %s51 = scalar_select %p48, %s49, %s50
      %p54 = pneg %p48
      %p55 = scmp.eq.s32.totalorder %s19, 3
      %p56 = por %p54, %p55
      %p57 = scmp.ne.s32.totalorder %s49, %s52
      %p58 = scmp.eq.s32.totalorder %s19, 0
      %p59 = por %p57, %p58
      %p60 = scmp.ne.s32.totalorder %s49, %s52
      %p61 = scmp.eq.s32.totalorder %s24, 3
      %p62 = por %p60, %p61
      %p63 = scmp.ne.s32.totalorder %s52, %s53
      %p64 = scmp.eq.s32.totalorder %s24, 0
      %p65 = por %p63, %p64
      %p66 = scmp.ne.s32.totalorder %s52, %s53
      %p67 = scmp.eq.s32.totalorder %s25, 3
      %p68 = por %p66, %p67
      %p70 = scmp.ne.s32.totalorder %s53, %s69
      %p71 = scmp.eq.s32.totalorder %s25, 0
      %p72 = por %p70, %p71
      %s73 = smul.u32 %s26, 2
      %s74 = sadd.s32 %s73, %s27
      %p75 = scmp.lt.s32.totalorder %s74, 2
      %s76 = scalar_select %p75, %s74, 2
      %s77 = smul.u32 %s38, 2
      %s78 = sadd.s32 %s77, %s34
      %p79 = scmp.lt.s32.totalorder %s78, 2
      %s80 = scalar_select %p79, %s78, 2
      %s81 = ssub.s32 %s76, %s80
      %p82 = scmp.eq.s32.totalorder %s81, 0
      %s84 = sadd.s32 %s83, 1
      %s85 = scalar_select %p82, %s83, %s84
      %p88 = pneg %p82
      %p89 = scmp.eq.s32.totalorder %s19, 3
      %p90 = por %p88, %p89
      %p91 = scmp.ne.s32.totalorder %s83, %s86
      %p92 = scmp.eq.s32.totalorder %s19, 0
      %p93 = por %p91, %p92
      %p94 = scmp.ne.s32.totalorder %s83, %s86
      %p95 = scmp.eq.s32.totalorder %s24, 3
      %p96 = por %p94, %p95
      %p97 = scmp.ne.s32.totalorder %s86, %s87
      %p98 = scmp.eq.s32.totalorder %s24, 0
      %p99 = por %p97, %p98
      %p100 = scmp.ne.s32.totalorder %s86, %s87
      %p101 = scmp.eq.s32.totalorder %s25, 3
      %p102 = por %p100, %p101
      %p104 = scmp.ne.s32.totalorder %s87, %s103
      %p105 = scmp.eq.s32.totalorder %s25, 0
      %p106 = por %p104, %p105
      %s107 = ssub.s32 %s26, %s38
      %p108 = scmp.eq.s32.totalorder %s107, 0
      %s110 = sadd.s32 %s109, 1
      %s111 = scalar_select %p108, %s109, %s110
      %p114 = pneg %p108
      %p115 = scmp.eq.s32.totalorder %s19, 3
      %p116 = por %p114, %p115
      %p117 = scmp.ne.s32.totalorder %s109, %s112
      %p118 = scmp.eq.s32.totalorder %s19, 0
      %p119 = por %p117, %p118
      %p120 = scmp.ne.s32.totalorder %s109, %s112
      %p121 = scmp.eq.s32.totalorder %s24, 3
      %p122 = por %p120, %p121
      %p123 = scmp.ne.s32.totalorder %s112, %s113
      %p124 = scmp.eq.s32.totalorder %s24, 0
      %p125 = por %p123, %p124
      %p126 = scmp.ne.s32.totalorder %s112, %s113
      %p127 = scmp.eq.s32.totalorder %s25, 3
      %p128 = por %p126, %p127
      %p130 = scmp.ne.s32.totalorder %s113, %s129
      %p131 = scmp.eq.s32.totalorder %s25, 0
      %p132 = por %p130, %p131
      %s133 = ssub.s32 %s26, %s38
      %p134 = scmp.eq.s32.totalorder %s133, 0
      %s136 = sadd.s32 %s135, 1
      %s137 = scalar_select %p134, %s135, %s136
      %p140 = pneg %p134
      %p141 = scmp.eq.s32.totalorder %s19, 3
      %p142 = por %p140, %p141
      %p143 = scmp.ne.s32.totalorder %s135, %s138
      %p144 = scmp.eq.s32.totalorder %s19, 0
      %p145 = por %p143, %p144
      %p146 = scmp.ne.s32.totalorder %s135, %s138
      %p147 = scmp.eq.s32.totalorder %s24, 3
      %p148 = por %p146, %p147
      %p149 = scmp.ne.s32.totalorder %s138, %s139
      %p150 = scmp.eq.s32.totalorder %s24, 0
      %p151 = por %p149, %p150
      %p152 = scmp.ne.s32.totalorder %s138, %s139
      %p153 = scmp.eq.s32.totalorder %s25, 3
      %p154 = por %p152, %p153
      %p156 = scmp.ne.s32.totalorder %s139, %s155
      %p157 = scmp.eq.s32.totalorder %s25, 0
      %p158 = por %p156, %p157
      %p159 = scmp.le.s32.totalorder 1, %s19
      %p160 = scmp.lt.s32.totalorder %s19, 5
      %p161 = pnand %p159, %p160
      %p162 = pneg %p161
      // Predicated region
      $region9: #{tpu_custom_call.1} parent=5 // pred_check
        _
      $region10: #{tpu_custom_call.1} parent=5 // pred_check_branch
        %164 = sbr.rel (%p161) target = $region12
      $region11: #{tpu_custom_call.1} parent=5 // pred_region
        %s165 = ssub.s32 %s19, 1
      $region12: #{tpu_custom_call.1} parent=5 // pred_fallthru
        _
      %p166 = scmp.lt.s32.totalorder %s19, 4
      // Predicated region
      $region13: #{tpu_custom_call.1} parent=5 // pred_check
        %p167 = pneg %p166
      $region14: #{tpu_custom_call.1} parent=5 // pred_check_branch
        %169 = sbr.rel (%p167) target = $region16
      $region15: #{tpu_custom_call.1} parent=5 // pred_region
        // Predicated region
        $region17: #{tpu_custom_call.1} parent=15 // pred_check
          %p170 = pneg %p59
        $region18: #{tpu_custom_call.1} parent=15 // pred_check_branch
          %172 = sbr.rel (%p170) target = $region20
        $region19: #{tpu_custom_call.1} parent=15 // pred_region
          %s173 = sand.u32 %s49, 1
          %s174 = scalar_lea.sflag [#allocation3], %s173
          %s175 = sand.u32 %s49, 1
          %s176 = smul.addr %s175, 8
          %s177 = scalar_lea.vmem [#allocation2], %s176
          %s178 = smul.u32 %s26, 2
          %s179 = sadd.s32 %s178, %s27
          %p180 = scmp.lt.s32.totalorder %s179, 2
          %s181 = scalar_select %p180, %s179, 2
          %s183 = ssub.s32 128, 128
          %184 = vsyncadd %s174, %s183
          %s185 = smul.addr %s181, 128
          %s186 = scalar_lea.hbm %s0, %s185
          %s188 = sshll.u32 %s177, 4
          %s189 = int_to_ptr.vmem [resolvable:$true] %s188
          %191 = dma.hbm_to_vmem [thread:$0]  %s186, 128, %s189, %s174
        $region20: #{tpu_custom_call.1} parent=15 // pred_fallthru
          _
        // Predicated region
        $region21: #{tpu_custom_call.1} parent=15 // pred_check
          %p192 = pneg %p93
        $region22: #{tpu_custom_call.1} parent=15 // pred_check_branch
          %194 = sbr.rel (%p192) target = $region24
        $region23: #{tpu_custom_call.1} parent=15 // pred_region
          %s195 = sand.u32 %s83, 1
          %s196 = scalar_lea.sflag [#allocation6], %s195
          %s197 = sand.u32 %s83, 1
          %s198 = smul.addr %s197, 8
          %s199 = scalar_lea.vmem [#allocation5], %s198
          %s200 = smul.u32 %s26, 2
          %s201 = sadd.s32 %s200, %s27
          %p202 = scmp.lt.s32.totalorder %s201, 2
          %s203 = scalar_select %p202, %s201, 2
          %s205 = ssub.s32 128, 128
          %206 = vsyncadd %s196, %s205
          %s207 = smul.addr %s203, 128
          %s208 = scalar_lea.hbm %s1, %s207
          %s210 = sshll.u32 %s199, 4
          %s211 = int_to_ptr.vmem [resolvable:$true] %s210
          %213 = dma.hbm_to_vmem [thread:$0]  %s208, 128, %s211, %s196
        $region24: #{tpu_custom_call.1} parent=15 // pred_fallthru
          _
      $region16: #{tpu_custom_call.1} parent=5 // pred_fallthru
        _
      %p214 = scmp.le.s32.totalorder 1, %s19
      %p215 = scmp.lt.s32.totalorder %s19, 5
      %p216 = pnand %p214, %p215
      %p217 = pneg %p216
      // Predicated region
      $region25: #{tpu_custom_call.1} parent=5 // pred_check
        _
      $region26: #{tpu_custom_call.1} parent=5 // pred_check_branch
        %219 = sbr.rel (%p216) target = $region28
      $region27: #{tpu_custom_call.1} parent=5 // pred_region
        %s220 = ssub.s32 %s19, 1
        %s221 = sand.u32 %s52, 1
        %s222 = scalar_lea.sflag [#allocation3], %s221
        %s223 = sand.u32 %s52, 1
        %s224 = smul.addr %s223, 8
        %s225 = scalar_lea.vmem [#allocation2], %s224
        // Predicated region
        $region29: #{tpu_custom_call.1} parent=27 // pred_check
          %p226 = pneg %p65
        $region30: #{tpu_custom_call.1} parent=27 // pred_check_branch
          %228 = sbr.rel (%p226) target = $region32
        $region31: #{tpu_custom_call.1} parent=27 // pred_region
          %229 = dma.done %s222, 128
        $region32: #{tpu_custom_call.1} parent=27 // pred_fallthru
          _
        %s230 = sand.u32 %s86, 1
        %s231 = scalar_lea.sflag [#allocation6], %s230
        %s232 = sand.u32 %s86, 1
        %s233 = smul.addr %s232, 8
        %s234 = scalar_lea.vmem [#allocation5], %s233
        // Predicated region
        $region33: #{tpu_custom_call.1} parent=27 // pred_check
          %p235 = pneg %p99
        $region34: #{tpu_custom_call.1} parent=27 // pred_check_branch
          %237 = sbr.rel (%p235) target = $region36
        $region35: #{tpu_custom_call.1} parent=27 // pred_region
          %238 = dma.done %s231, 128
        $region36: #{tpu_custom_call.1} parent=27 // pred_fallthru
          _
        %s239 = sand.u32 %s52, 1
        %s240 = scalar_lea.sflag [#allocation3], %s239
        %s241 = sand.u32 %s52, 1
        %s242 = smul.addr %s241, 8
        %s243 = scalar_lea.vmem [#allocation2], %s242
        %p244 = pneg %p65
        %p245 = pneg %p62
        %s246 = sand.u32 %s86, 1
        %s247 = scalar_lea.sflag [#allocation6], %s246
        %s248 = sand.u32 %s86, 1
        %s249 = smul.addr %s248, 8
        %s250 = scalar_lea.vmem [#allocation5], %s249
        %p251 = pneg %p99
        %p252 = pneg %p96
        %p253 = pneg %p125
        %p254 = pneg %p122
        %s255 = sand.u32 %s112, 1
        %s256 = scalar_lea.sflag [#allocation4], %s255
        %s257 = sand.u32 %s112, 1
        %s258 = smul.addr %s257, 40
        %s259 = scalar_lea.vmem [#allocation7], %s258
        %p260 = pneg %p151
        %p261 = pneg %p148
        %p262 = scmp.lt.s32.totalorder %s28, 1
        %s263 = scalar_select %p262, %s28, 1
        %s264 = smul.addr %s263, 8
        %s265 = scalar_lea.vmem %s3, %s264
        %s266 = smul.u32 %s28, 2
        %s267 = sadd.s32 %s266, %s29
        %p268 = scmp.lt.s32.totalorder %s267, 2
        %s269 = scalar_select %p268, %s267, 2
        %s270 = smul.u32 %s28, 2
        %s271 = sadd.s32 %s270, %s29
        %p272 = scmp.lt.s32.totalorder %s271, 2
        %s273 = scalar_select %p272, %s271, 2
        %p274 = scmp.lt.s32.totalorder %s28, 1
        %s275 = scalar_select %p274, %s28, 1
        %s276 = smul.addr %s275, 8
        %s277 = scalar_lea.vmem %s3, %s276
        %p278 = scmp.eq.s32.totalorder %s29, 0
        // Predicated region
        $region37: #{tpu_custom_call.1} parent=27 // pred_check
          %p279 = pneg %p278
        $region38: #{tpu_custom_call.1} parent=27 // pred_check_branch
          %281 = sbr.rel (%p279) target = $region40
        $region39: #{tpu_custom_call.1} parent=27 // pred_region
          %vm282 = vcmask 326656
          %283 = vst.msk [vmem:[%s259] sm:$0xff] %vm282, 0.0
          %284 = vst.msk [vmem:[%s259 + $0x8] sm:$0xff] %vm282, 0.0
          %285 = vst.msk [vmem:[%s259 + $0x10] sm:$0xff] %vm282, 0.0
          %286 = vst.msk [vmem:[%s259 + $0x18] sm:$0xff] %vm282, 0.0
          %287 = vst.msk [vmem:[%s259 + $0x20] sm:$0xff] %vm282, 0.0
          %vm288 = vcmask 7168
          %289 = vst.msk [vmem:[%s277] sm:$0xff] %vm288, 0.0
        $region40: #{tpu_custom_call.1} parent=27 // pred_fallthru
          _
        %v290 = vld [vmem:[%s225] sm:$0xff]
        %v291 = vmul.f32 %v290, 0.25
        %vm292 = vcmask 326656
        %v293 = vsel %vm292, %v291, -inf
        %294 = vmax.xlane.f32.xlu0 %v293
        %v295 = vpop.xlane.xlu0 %294
        %v296 = vsub.f32 %v291, %v295
        %v297 = vmul.f32 %v296, 1.442695
        %v298 = vpow.pop %v297
        %v299 = vsel %vm292, %v298, 0.0
        %300 = vadd.xlane.f32.xlu0 %v299
        %v301 = vpop.xlane.xlu0 %300
        %v302 = vrcp.pop %v301
        %v303 = vmul.f32 %v298, %v302
        %v304 = vsub.f32 %v303, 0.025
        %v305 = vld [vmem:[%s234] sm:$0xff]
        %v306 = vmul.f32 %v305, 0.25
        %v307 = vsel %vm292, %v306, -inf
        %308 = vmax.xlane.f32.xlu0 %v307
        %v309 = vpop.xlane.xlu0 %308
        %v310 = vsub.f32 %v306, %v309
        %v311 = vmul.f32 %v310, 1.442695
        %v312 = vpow.pop %v311
        %v313 = vsel %vm292, %v312, 0.0
        %314 = vadd.xlane.f32.xlu0 %v313
        %v315 = vpop.xlane.xlu0 %314
        %v316 = vrcp.pop %v315
        %v317 = vmul.f32 %v312, %v316
        %v318 = vsub.f32 %v317, 0.025
        %s319 = smul.u32 %s28, 2
        %s320 = sadd.s32 %s319, %s29
        %s321 = smul.u32 %s320, 8
        %v322 = vlaneseq
        %v323 = vshrl.u32 %v322, 7
        %v324 = vstv %s321
        %v325 = vadd.s32 %v323, %v324
        %vm326 = vcmp.lt.s32.totalorder %v325, 20
        %v327 = vsel %vm326, 1, 0
        %vm328 = vcmp.eq.s32.totalorder %v327, 1
        %v329 = vsel %vm328, %v304, 0.0
        %v330 = vsel %vm328, %v318, 0.0
        %v331 = vmul.f32 %v329, %v330
        %v332 = vsel %vm292, %v331, 0.0
        %333 = vadd.xlane.f32.xlu0 %v332
        %v334 = vpop.xlane.xlu0 %333
        %s335 = scalar_lea.vmem %s259, 16 [#allocation7]
        %v336 = vld [vmem:[%s335] sm:$0xff]
        %v337 = vadd.f32 %v331, 0.0
        %v338 = vadd.f32 %v336, %v337
        %339 = vst.msk [vmem:[%s335] sm:$0xff] %vm292, %v338
        %v340 = vmul.f32 %v329, %v329
        %v341 = vsel %vm292, %v340, 0.0
        %342 = vadd.xlane.f32.xlu0 %v341
        %v343 = vpop.xlane.xlu0 %342
        %s344 = scalar_lea.vmem %s259, 24 [#allocation7]
        %v345 = vld [vmem:[%s344] sm:$0xff]
        %v346 = vadd.f32 %v340, 0.0
        %v347 = vadd.f32 %v345, %v346
        %348 = vst.msk [vmem:[%s344] sm:$0xff] %vm292, %v347
        %v349 = vmul.f32 %v330, %v330
        %v350 = vsel %vm292, %v349, 0.0
        %351 = vadd.xlane.f32.xlu0 %v350
        %v352 = vpop.xlane.xlu0 %351
        %s353 = scalar_lea.vmem %s259, 32 [#allocation7]
        %v354 = vld [vmem:[%s353] sm:$0xff]
        %v355 = vadd.f32 %v349, 0.0
        %v356 = vadd.f32 %v354, %v355
        %357 = vst.msk [vmem:[%s353] sm:$0xff] %vm292, %v356
        %v358 = vld [vmem:[%s259] sm:$0xff]
        %v359 = vadd.f32 %v329, 0.0
        %v360 = vadd.f32 %v358, %v359
        %361 = vst.msk [vmem:[%s259] sm:$0xff] %vm292, %v360
        %s362 = scalar_lea.vmem %s259, 8 [#allocation7]
        %v363 = vld [vmem:[%s362] sm:$0xff]
        %v364 = vadd.f32 %v330, 0.0
        %v365 = vadd.f32 %v363, %v364
        %366 = vst.msk [vmem:[%s362] sm:$0xff] %vm292, %v365
        %v367 = vmul.f32 %v343, %v352
        %v368 = vrsqrt.pop %v367
        %v369 = vmul.f32 %v367, %v368
        %vm370 = vcmp.eq.f32.partialorder %v367, inf
        %v371 = vsel %vm370, %v367, %v369
        %vm372 = vcmp.eq.f32.partialorder %v367, 0.0
        %v373 = vand.u32 %v367, 2147483648
        %v374 = vsel %vm372, %v373, %v371
        %v375 = vadd.f32 %v374, 1e-08
        %v376 = vrcp.pop %v375
        %v377 = vmul.f32 %v334, %v376
        %v378 = vld [vmem:[%s277] sm:$0xff]
        %v379 = vadd.f32 %v377, 0.0
        %v380 = vadd.f32 %v378, %v379
        %vm381 = vcmask 7168
        %382 = vst.msk [vmem:[%s277] sm:$0xff] %vm381, %v380
        %s383 = sand.u32 %s112, 1
        %s384 = scalar_lea.sflag [#allocation4], %s383
        %s385 = sand.u32 %s112, 1
        %s386 = smul.addr %s385, 40
        %s387 = scalar_lea.vmem [#allocation7], %s386
        %p388 = scmp.lt.s32.totalorder %s28, 1
        %s389 = scalar_select %p388, %s28, 1
        %s390 = smul.addr %s389, 8
        %s391 = scalar_lea.vmem %s3, %s390
        // Predicated region
        $region41: #{tpu_custom_call.1} parent=27 // pred_check
          %p392 = pneg %p122
        $region42: #{tpu_custom_call.1} parent=27 // pred_check_branch
          %394 = sbr.rel (%p392) target = $region44
        $region43: #{tpu_custom_call.1} parent=27 // pred_region
          %s396 = ssub.s32 640, 640
          %397 = vsyncadd %s384, %s396
          %s398 = smul.addr %s28, 5
          %s399 = smul.addr %s398, 128
          %s400 = scalar_lea.hbm %s2, %s399
          %s401 = sshll.u32 %s387, 4
          %s402 = int_to_ptr.vmem [resolvable:$true] %s401
          %407 = dma.vmem_to_hbm [thread:$0]  %s402, 640, %s400, %s384, 128, 128, 8
        $region44: #{tpu_custom_call.1} parent=27 // pred_fallthru
          _
        // Predicated region
        $region45: #{tpu_custom_call.1} parent=27 // pred_check
          %p408 = pneg %p148
        $region46: #{tpu_custom_call.1} parent=27 // pred_check_branch
          %410 = sbr.rel (%p408) target = $region48
        $region47: #{tpu_custom_call.1} parent=27 // pred_region
          _
        $region48: #{tpu_custom_call.1} parent=27 // pred_fallthru
          _
      $region28: #{tpu_custom_call.1} parent=5 // pred_fallthru
        _
      %p411 = scmp.le.s32.totalorder 2, %s19
      // Predicated region
      $region49: #{tpu_custom_call.1} parent=5 // pred_check
        %p412 = pneg %p411
      $region50: #{tpu_custom_call.1} parent=5 // pred_check_branch
        %414 = sbr.rel (%p412) target = $region52
      $region51: #{tpu_custom_call.1} parent=5 // pred_region
        %s415 = ssub.s32 %s19, 2
        // Predicated region
        $region53: #{tpu_custom_call.1} parent=51 // pred_check
          %p416 = pneg %p128
        $region54: #{tpu_custom_call.1} parent=51 // pred_check_branch
          %418 = sbr.rel (%p416) target = $region56
        $region55: #{tpu_custom_call.1} parent=51 // pred_region
          %s419 = sand.u32 %s113, 1
          %s420 = scalar_lea.sflag [#allocation4], %s419
          %s421 = sand.u32 %s113, 1
          %s422 = smul.addr %s421, 40
          %s423 = scalar_lea.vmem [#allocation7], %s422
          %424 = dma.done %s420, 640
        $region56: #{tpu_custom_call.1} parent=51 // pred_fallthru
          _
        // Predicated region
        $region57: #{tpu_custom_call.1} parent=51 // pred_check
          %p425 = pneg %p154
        $region58: #{tpu_custom_call.1} parent=51 // pred_check_branch
          %427 = sbr.rel (%p425) target = $region60
        $region59: #{tpu_custom_call.1} parent=51 // pred_region
          %p428 = scmp.lt.s32.totalorder %s30, 1
          %s429 = scalar_select %p428, %s30, 1
          %s430 = smul.addr %s429, 8
          %s431 = scalar_lea.vmem %s3, %s430
        $region60: #{tpu_custom_call.1} parent=51 // pred_fallthru
          _
      $region52: #{tpu_custom_call.1} parent=5 // pred_fallthru
        _
    $region6: #{tpu_custom_call.1} parent=1 // loop_footer
      %s23 = sadd.s32 1, %s19
    $region7: #{tpu_custom_call.1} parent=1 // loop_footer_branch
      %18 = sbr.rel target = $region3
    $region8: #{tpu_custom_call.1} parent=1 // loop_exit
      _
    %432 = vsyncpa [#allocation3], 1
    %s433 = scalar_lea.sflag [#allocation3], 1
    %434 = vsyncpa %s433, 1
    %435 = vsyncpa [#allocation6], 1
    %s436 = scalar_lea.sflag [#allocation6], 1
    %437 = vsyncpa %s436, 1
    %438 = vsyncpa [#allocation4], 1
    %s439 = scalar_lea.sflag [#allocation4], 1
    %440 = vsyncpa %s439, 1

</llo_original>
